<compile_context>
chip_gen: v7x
topology: tpu7x:2x2x1
jax: 0.10.0
libtpu: 0.0.40
codegen_flags: <defaults>
</compile_context>

<pallas_src>
import jax
import jax.numpy as jnp
from jax.experimental import pallas as pl
from jax.experimental.pallas import tpu as pltpu


LANE = 128


def _ru(n, m=LANE):
    return ((n + m - 1) // m) * m


def _pad2(a, rows, cols):
    """Zero-pad a 2-D array up to (rows, cols)."""
    return jnp.pad(a, ((0, rows - a.shape[0]), (0, cols - a.shape[1])))


def init_params(key, input_dims, l1_dims, l2_dims, n_action):
    """Deterministic init mimicking nn.Linear's U(-1/sqrt(fan_in), 1/sqrt(fan_in)).
    Weights stored pre-transposed as [in, out] f32; biases as [1, out] f32."""
    ks = jax.random.split(key, 6)

    def lin(kw, kb, fan_in, fan_out):
        bound = 1.0 / jnp.sqrt(fan_in)
        w = jax.random.uniform(kw, (fan_in, fan_out), jnp.float32, -bound, bound)
        b = jax.random.uniform(kb, (1, fan_out), jnp.float32, -bound, bound)
        return w, b

    w1, b1 = lin(ks[0], ks[1], input_dims, l1_dims)
    w2, b2 = lin(ks[2], ks[3], l1_dims, l2_dims)
    w3, b3 = lin(ks[4], ks[5], l2_dims, n_action)
    return (w1, b1, w2, b2, w3, b3)


def pack_params(raw_params):
    """One-time (outside the forward) lane-pad to 128 multiples and cast the
    weight matrices to bf16 for the MXU.  Biases stay f32."""
    w1, b1, w2, b2, w3, b3 = raw_params
    d_in, h1 = w1.shape
    h2, n_act = w2.shape[1], w3.shape[1]
    Dp, H1p, H2p, Np = _ru(d_in), _ru(h1), _ru(h2), _ru(n_act)
    w1p = _pad2(w1, Dp, H1p).astype(jnp.bfloat16)
    w2p = _pad2(w2, H1p, H2p).astype(jnp.bfloat16)
    w3p = _pad2(w3, H2p, Np).astype(jnp.bfloat16)
    b1p = _pad2(b1, 1, H1p)
    b2p = _pad2(b2, 1, H2p)
    b3p = _pad2(b3, 1, Np)
    return (w1p, b1p, w2p, b2p, w3p, b3p)


def make_dqn_forward(input_dims, l1_dims, l2_dims, n_action):
    """Returns a jitted forward(x, packed_params) -> [B, n_action] softmax(dim=0)."""
    Dp, H1p, H2p, Np = _ru(input_dims), _ru(l1_dims), _ru(l2_dims), _ru(n_action)

    def kernel(x_ref, w1_ref, b1_ref, w2_ref, b2_ref, w3_ref, b3_ref, o_ref):
        B = x_ref.shape[0]

        # Lane-pad x to 128 and cast to bf16 inside VMEM (cheap, hides under MXU).
        xb = x_ref[...].astype(jnp.bfloat16)
        if Dp > input_dims:
            xb = jnp.concatenate(
                [xb, jnp.zeros((B, Dp - input_dims), jnp.bfloat16)], axis=1)

        # Layer 1: bf16 MXU matmul, f32 accumulate; bias + ReLU in f32.
        h1 = jnp.dot(xb, w1_ref[...], preferred_element_type=jnp.float32)
        h1 = jnp.maximum(h1 + b1_ref[...], 0.0).astype(jnp.bfloat16)

        # Layer 2
        h2 = jnp.dot(h1, w2_ref[...], preferred_element_type=jnp.float32)
        h2 = jnp.maximum(h2 + b2_ref[...], 0.0).astype(jnp.bfloat16)

        # Layer 3 (logits in f32); drop padded action columns before softmax.
        logits = jnp.dot(h2, w3_ref[...], preferred_element_type=jnp.float32)
        logits = logits + b3_ref[...]
        logits = logits[:, :n_action]

        # Softmax over dim=0 (batch axis), matching nn.Softmax(dim=0).
        m = jnp.max(logits, axis=0, keepdims=True)
        e = jnp.exp(logits - m)
        s = jnp.sum(e, axis=0, keepdims=True)
        # Exact divide: s is a single [1, n_action] vreg, so this is essentially
        # free and keeps every column summing to 1 at f32 precision.
        o_ref[...] = e / s

    def forward(x, params):
        w1p, b1p, w2p, b2p, w3p, b3p = params
        B = x.shape[0]

        # Advisory scheduler hint from the REAL (unpadded) dims.
        flops = 2 * B * (input_dims * l1_dims + l1_dims * l2_dims + l2_dims * n_action)
        bytes_accessed = (
            4 * x.size                                       # f32 input
            + 2 * (w1p.size + w2p.size + w3p.size)           # bf16 weights
            + 4 * (b1p.size + b2p.size + b3p.size)           # f32 biases
            + 4 * B * n_action                               # f32 output
        )

        # Residency estimate for the single resident block (no grid):
        resident = (
            4 * x.size                                       # x in VMEM (f32)
            + 2 * B * Dp                                     # padded bf16 x
            + 4 * B * (H1p + H2p + Np)                       # f32 intermediates
            + 2 * B * (H1p + H2p)                            # bf16 activations
            + 2 * (w1p.size + w2p.size + w3p.size)
            + 4 * (b1p.size + b2p.size + b3p.size)
            + 4 * B * n_action                               # output
        )
        # >= 32 MiB (above every generation's default scoped limit, helps v5e),
        # <= 64 MiB (legal on v7x's smaller physical VMEM).
        vmem_limit = int(min(64 * 1024 * 1024, max(32 * 1024 * 1024, 2 * resident)))

        vmem = pl.BlockSpec(memory_space=pltpu.MemorySpace.VMEM)
        return pl.pallas_call(
            kernel,
            out_shape=jax.ShapeDtypeStruct((B, n_action), jnp.float32),
            in_specs=[vmem] * 7,
            out_specs=vmem,
            cost_estimate=pl.CostEstimate(
                flops=flops,
                transcendentals=B * n_action,
                bytes_accessed=bytes_accessed,
            ),
            compiler_params=pltpu.CompilerParams(vmem_limit_bytes=vmem_limit),
        )(x, w1p, b1p, w2p, b2p, w3p, b3p)

    return jax.jit(forward)


def reference_forward(x, raw_params):
    """Pure-JAX f32 reference matching the PyTorch forward."""
    w1, b1, w2, b2, w3, b3 = raw_params
    h1 = jnp.maximum(x @ w1 + b1, 0.0)
    h2 = jnp.maximum(h1 @ w2 + b2, 0.0)
    logits = h2 @ w3 + b3
    return jax.nn.softmax(logits, axis=0)


if __name__ == "__main__":
    # Shapes consistent with the module: input_dims=16, l1=32, l2=32, n_action=8.
    input_dims, l1_dims, l2_dims, n_action = 16, 32, 32, 8

    key = jax.random.PRNGKey(0)
    k_x, k_x2, k_p = jax.random.split(key, 3)

    raw_params = init_params(k_p, input_dims, l1_dims, l2_dims, n_action)
    params = pack_params(raw_params)      # pad/cast ONCE, outside the forward

    fwd = make_dqn_forward(input_dims, l1_dims, l2_dims, n_action)

    ok = True
    for batch, kx in ((2, k_x), (64, k_x2)):
        x = jax.random.normal(kx, (batch, input_dims), dtype=jnp.float32)
        out = jax.block_until_ready(fwd(x, params))
        ref = reference_forward(x, raw_params)
        assert out.shape == (batch, n_action)
        # bf16 MXU matmuls => compare with bf16-level tolerance.
        ok &= bool(jnp.allclose(out, ref, atol=3e-2, rtol=3e-2))
        # softmax over dim=0 with an exact divide: every column sums to ~1.
        ok &= bool(jnp.allclose(jnp.sum(out, axis=0), 1.0, atol=1e-3))

    assert ok, "mismatch vs reference"
    print("KERNEL_OK")
</pallas_src>

<mosaic_0001>
module attributes {stable_mosaic.version = 11 : i64} {
  func.func @kernel(%arg0: memref<2x16xf32, #tpu.memory_space<vmem>>, %arg1: memref<128x128xbf16, #tpu.memory_space<vmem>>, %arg2: memref<1x128xf32, #tpu.memory_space<vmem>>, %arg3: memref<128x128xbf16, #tpu.memory_space<vmem>>, %arg4: memref<1x128xf32, #tpu.memory_space<vmem>>, %arg5: memref<128x128xbf16, #tpu.memory_space<vmem>>, %arg6: memref<1x128xf32, #tpu.memory_space<vmem>>, %arg7: memref<2x8xf32, #tpu.memory_space<vmem>>) attributes {dimension_semantics = [], scalar_prefetch = 0 : i64, scratch_operands = 0 : i64, tpu.core_type = #tpu.core_type<tc>} {
    %c0 = arith.constant 0 : index
    %c0_0 = arith.constant 0 : index
    %0 = vector.load %arg0[%c0, %c0_0] : memref<2x16xf32, #tpu.memory_space<vmem>>, vector<2x16xf32>
    %1 = arith.truncf %0 : vector<2x16xf32> to vector<2x16xbf16>
    %cst = arith.constant 0.000000e+00 : bf16
    %2 = vector.broadcast %cst : bf16 to vector<2x112xbf16>
    %3 = tpu.concatenate %1, %2 in 1 : vector<2x16xbf16>, vector<2x112xbf16> -> vector<2x128xbf16>
    %c0_1 = arith.constant 0 : index
    %c0_2 = arith.constant 0 : index
    %4 = vector.load %arg1[%c0_1, %c0_2] : memref<128x128xbf16, #tpu.memory_space<vmem>>, vector<128x128xbf16>
    %cst_3 = arith.constant dense<0.000000e+00> : vector<2x128xf32>
    %5 = tpu.matmul %3, %4, %cst_3 {dimension_numbers = #tpu.dot_dimension_numbers<[1], [0], [0], [1], [0, 0, 1, 1], [], []>} : vector<2x128xbf16>, vector<128x128xbf16>, vector<2x128xf32> -> vector<2x128xf32>
    %c0_4 = arith.constant 0 : index
    %c0_5 = arith.constant 0 : index
    %6 = vector.load %arg2[%c0_4, %c0_5] : memref<1x128xf32, #tpu.memory_space<vmem>>, vector<1x128xf32>
    %7 = vector.broadcast %6 : vector<1x128xf32> to vector<2x128xf32>
    %8 = arith.addf %5, %7 : vector<2x128xf32>
    %cst_6 = arith.constant 0.000000e+00 : f32
    %9 = vector.broadcast %cst_6 : f32 to vector<2x128xf32>
    %10 = arith.maximumf %8, %9 : vector<2x128xf32>
    %11 = arith.truncf %10 : vector<2x128xf32> to vector<2x128xbf16>
    %c0_7 = arith.constant 0 : index
    %c0_8 = arith.constant 0 : index
    %12 = vector.load %arg3[%c0_7, %c0_8] : memref<128x128xbf16, #tpu.memory_space<vmem>>, vector<128x128xbf16>
    %cst_9 = arith.constant dense<0.000000e+00> : vector<2x128xf32>
    %13 = tpu.matmul %11, %12, %cst_9 {dimension_numbers = #tpu.dot_dimension_numbers<[1], [0], [0], [1], [0, 0, 1, 1], [], []>} : vector<2x128xbf16>, vector<128x128xbf16>, vector<2x128xf32> -> vector<2x128xf32>
    %c0_10 = arith.constant 0 : index
    %c0_11 = arith.constant 0 : index
    %14 = vector.load %arg4[%c0_10, %c0_11] : memref<1x128xf32, #tpu.memory_space<vmem>>, vector<1x128xf32>
    %15 = vector.broadcast %14 : vector<1x128xf32> to vector<2x128xf32>
    %16 = arith.addf %13, %15 : vector<2x128xf32>
    %cst_12 = arith.constant 0.000000e+00 : f32
    %17 = vector.broadcast %cst_12 : f32 to vector<2x128xf32>
    %18 = arith.maximumf %16, %17 : vector<2x128xf32>
    %19 = arith.truncf %18 : vector<2x128xf32> to vector<2x128xbf16>
    %c0_13 = arith.constant 0 : index
    %c0_14 = arith.constant 0 : index
    %20 = vector.load %arg5[%c0_13, %c0_14] : memref<128x128xbf16, #tpu.memory_space<vmem>>, vector<128x128xbf16>
    %cst_15 = arith.constant dense<0.000000e+00> : vector<2x128xf32>
    %21 = tpu.matmul %19, %20, %cst_15 {dimension_numbers = #tpu.dot_dimension_numbers<[1], [0], [0], [1], [0, 0, 1, 1], [], []>} : vector<2x128xbf16>, vector<128x128xbf16>, vector<2x128xf32> -> vector<2x128xf32>
    %c0_16 = arith.constant 0 : index
    %c0_17 = arith.constant 0 : index
    %22 = vector.load %arg6[%c0_16, %c0_17] : memref<1x128xf32, #tpu.memory_space<vmem>>, vector<1x128xf32>
    %23 = vector.broadcast %22 : vector<1x128xf32> to vector<2x128xf32>
    %24 = arith.addf %21, %23 : vector<2x128xf32>
    %25 = vector.extract_strided_slice %24 {offsets = [0, 0], sizes = [2, 8], strides = [1, 1]} : vector<2x128xf32> to vector<2x8xf32>
    %cst_18 = arith.constant dense<0xFF800000> : vector<8xf32>
    %26 = vector.multi_reduction <maximumf>, %25, %cst_18 [0] : vector<2x8xf32> to vector<8xf32>
    %27 = vector.shape_cast %26 : vector<8xf32> to vector<1x8xf32>
    %28 = vector.broadcast %27 : vector<1x8xf32> to vector<2x8xf32>
    %29 = arith.subf %25, %28 : vector<2x8xf32>
    %30 = math.exp %29 : vector<2x8xf32>
    %cst_19 = arith.constant dense<0.000000e+00> : vector<8xf32>
    %31 = vector.multi_reduction <add>, %30, %cst_19 [0] : vector<2x8xf32> to vector<8xf32>
    %32 = vector.shape_cast %31 : vector<8xf32> to vector<1x8xf32>
    %33 = vector.broadcast %32 : vector<1x8xf32> to vector<2x8xf32>
    %34 = arith.divf %30, %33 : vector<2x8xf32>
    %c0_20 = arith.constant 0 : index
    %c0_21 = arith.constant 0 : index
    %35 = vector.load %arg7[%c0_20, %c0_21] : memref<2x8xf32, #tpu.memory_space<vmem>>, vector<2x8xf32>
    tpu.vector_store %arg7[%c0_20, %c0_21], %34 {strides = array<i32>} : memref<2x8xf32, #tpu.memory_space<vmem>>, vector<2x8xf32>,
    return
  }
}

</mosaic_0001>

<llo_original>
// kernel: forward.1
$region0: #{forward.1}
  #allocation0 [shape = 'u32[]', space=smem, size = 0x4, offset = 0x4, fixed_abs, tag = 'smem constant byte address 0x4 - core index']
  #allocation1 [shape = 'u32[144,128]{1,0:T(1,128)}', space=vmem, size = 0x12000, scoped, tag = 'internal scratch']
  %s0 = inlined_call_operand.hbm [shape: f32[2,16], index: 0, kind: input, shape index: {}]
  %s1 = inlined_call_operand.hbm [shape: bf16[128,128], index: 1, kind: input, shape index: {}]
  %s2 = inlined_call_operand.vmem [shape: f32[1,128], index: 2, kind: input, shape index: {}]
  %s3 = inlined_call_operand.hbm [shape: bf16[128,128], index: 3, kind: input, shape index: {}]
  %s4 = inlined_call_operand.vmem [shape: f32[1,128], index: 4, kind: input, shape index: {}]
  %s5 = inlined_call_operand.hbm [shape: bf16[128,128], index: 5, kind: input, shape index: {}]
  %s6 = inlined_call_operand.vmem [shape: f32[1,128], index: 6, kind: input, shape index: {}]
  %s7 = inlined_call_operand.hbm [shape: f32[2,8], index: 7, kind: output, shape index: {}]
  %s8 = sld [smem:[#allocation0]]
  $region54: #{forward.1} parent=0
    _
  %s10 = ssub.s32 1, %s8
  %s11 = scalar_select 0, %s10, %s8
  $region1: #{forward.1} parent=0
    #allocation2 [shape = 'u8[1024]{0}', space=vmem, size = 0x400, scoped, tag = 'input window, operand 0, single buffered']
    #allocation3 [shape = 's32[1]{0}', space=sflag, size = 0x4, scoped, tag = 'scoped memory for forward.1']
    #allocation4 [shape = 's32[1]{0}', space=sflag, size = 0x4, scoped, tag = 'scoped memory for forward.1']
    #allocation5 [shape = 'u8[32768]{0}', space=vmem, size = 0x8000, scoped, tag = 'input window, operand 1, single buffered']
    #allocation6 [shape = 's32[1]{0}', space=sflag, size = 0x4, scoped, tag = 'scoped memory for forward.1']
    #allocation7 [shape = 'u8[32768]{0}', space=vmem, size = 0x8000, scoped, tag = 'input window, operand 3, single buffered']
    #allocation8 [shape = 'u8[32768]{0}', space=vmem, size = 0x8000, scoped, tag = 'input window, operand 5, single buffered']
    #allocation9 [shape = 's32[1]{0}', space=sflag, size = 0x4, scoped, tag = 'scoped memory for forward.1']
    #allocation10 [shape = 'u8[1024]{0}', space=vmem, size = 0x400, scoped, tag = 'output window, operand 0, single buffered']
    %12 = vsyncpa [#allocation3], 0
    %13 = vsyncpa [#allocation6], 0
    %14 = vsyncpa [#allocation9], 0
    %15 = vsyncpa [#allocation4], 0
    // Predicated region
    $region2: #{forward.1} parent=1 // pred_check
      _
    $region3: #{forward.1} parent=1 // pred_check_branch
      %17 = sbr.rel (0) target = $region5
    $region4: #{forward.1} parent=1 // pred_region
      %s19 = ssub.s32 32, 32
      %20 = vsyncadd [#allocation3], %s19
      %s22 = sshll.u32 [#allocation2], 4
      %s23 = int_to_ptr.vmem [resolvable:$true] %s22
      %25 = dma.hbm_to_vmem [thread:$0]  %s0, 32, %s23, [#allocation3]
    $region5: #{forward.1} parent=1 // pred_fallthru
      _
    // Predicated region
    $region6: #{forward.1} parent=1 // pred_check
      _
    $region7: #{forward.1} parent=1 // pred_check_branch
      %27 = sbr.rel (0) target = $region9
    $region8: #{forward.1} parent=1 // pred_region
      %s29 = ssub.s32 1024, 1024
      %30 = vsyncadd [#allocation6], %s29
      %s31 = sshll.u32 [#allocation5], 4
      %s32 = int_to_ptr.vmem [resolvable:$true] %s31
      %37 = dma.hbm_to_vmem [thread:$0]  %s1, 1024, %s32, [#allocation6], 64, 64, 4
    $region9: #{forward.1} parent=1 // pred_fallthru
      _
    // Predicated region
    $region10: #{forward.1} parent=1 // pred_check
      _
    $region11: #{forward.1} parent=1 // pred_check_branch
      %39 = sbr.rel (0) target = $region13
    $region12: #{forward.1} parent=1 // pred_region
      _
    $region13: #{forward.1} parent=1 // pred_fallthru
      _
    // Predicated region
    $region14: #{forward.1} parent=1 // pred_check
      _
    $region15: #{forward.1} parent=1 // pred_check_branch
      %41 = sbr.rel (0) target = $region17
    $region16: #{forward.1} parent=1 // pred_region
      %s43 = ssub.s32 1024, 1024
      %44 = vsyncadd [#allocation6], %s43
      %s45 = sshll.u32 [#allocation7], 4
      %s46 = int_to_ptr.vmem [resolvable:$true] %s45
      %51 = dma.hbm_to_vmem [thread:$0]  %s3, 1024, %s46, [#allocation6], 64, 64, 4
    $region17: #{forward.1} parent=1 // pred_fallthru
      _
    // Predicated region
    $region18: #{forward.1} parent=1 // pred_check
      _
    $region19: #{forward.1} parent=1 // pred_check_branch
      %53 = sbr.rel (0) target = $region21
    $region20: #{forward.1} parent=1 // pred_region
      _
    $region21: #{forward.1} parent=1 // pred_fallthru
      _
    // Predicated region
    $region22: #{forward.1} parent=1 // pred_check
      _
    $region23: #{forward.1} parent=1 // pred_check_branch
      %55 = sbr.rel (0) target = $region25
    $region24: #{forward.1} parent=1 // pred_region
      %s57 = ssub.s32 1024, 1024
      %58 = vsyncadd [#allocation9], %s57
      %s59 = sshll.u32 [#allocation8], 4
      %s60 = int_to_ptr.vmem [resolvable:$true] %s59
      %65 = dma.hbm_to_vmem [thread:$0]  %s5, 1024, %s60, [#allocation9], 64, 64, 4
    $region25: #{forward.1} parent=1 // pred_fallthru
      _
    // Predicated region
    $region26: #{forward.1} parent=1 // pred_check
      _
    $region27: #{forward.1} parent=1 // pred_check_branch
      %67 = sbr.rel (0) target = $region29
    $region28: #{forward.1} parent=1 // pred_region
      _
    $region29: #{forward.1} parent=1 // pred_fallthru
      _
    // Predicated region
    $region30: #{forward.1} parent=1 // pred_check
      _
    $region31: #{forward.1} parent=1 // pred_check_branch
      %69 = sbr.rel (0) target = $region33
    $region32: #{forward.1} parent=1 // pred_region
      %70 = dma.done [#allocation3], 32
    $region33: #{forward.1} parent=1 // pred_fallthru
      _
    // Predicated region
    $region34: #{forward.1} parent=1 // pred_check
      _
    $region35: #{forward.1} parent=1 // pred_check_branch
      %72 = sbr.rel (0) target = $region37
    $region36: #{forward.1} parent=1 // pred_region
      %73 = dma.done [#allocation6], 1024
    $region37: #{forward.1} parent=1 // pred_fallthru
      _
    // Predicated region
    $region38: #{forward.1} parent=1 // pred_check
      _
    $region39: #{forward.1} parent=1 // pred_check_branch
      %75 = sbr.rel (0) target = $region41
    $region40: #{forward.1} parent=1 // pred_region
      %76 = dma.done [#allocation6], 1024
    $region41: #{forward.1} parent=1 // pred_fallthru
      _
    // Predicated region
    $region42: #{forward.1} parent=1 // pred_check
      _
    $region43: #{forward.1} parent=1 // pred_check_branch
      %78 = sbr.rel (0) target = $region45
    $region44: #{forward.1} parent=1 // pred_region
      %79 = dma.done [#allocation9], 1024
    $region45: #{forward.1} parent=1 // pred_fallthru
      _
    %v81 = vld [vmem:[#allocation2] sm:$0x3]
    %v82 = vpack.c.bf16 %v81, %v81
    %vm83 = vcmask 130048
    %v86 = vsel %vm83, %v82, 0
    %v88 = vld [vmem:[#allocation5] sm:$0xf]
    %v89 = vld [vmem:[#allocation5 + $0x4] sm:$0xf]
    %v90 = vld [vmem:[#allocation5 + $0x8] sm:$0xf]
    %v91 = vld [vmem:[#allocation5 + $0xc] sm:$0xf]
    %v92 = vld [vmem:[#allocation5 + $0x10] sm:$0xf]
    %v93 = vld [vmem:[#allocation5 + $0x14] sm:$0xf]
    %v94 = vld [vmem:[#allocation5 + $0x18] sm:$0xf]
    %v95 = vld [vmem:[#allocation5 + $0x1c] sm:$0xf]
    %v96 = vld [vmem:[#allocation5 + $0x20] sm:$0xf]
    %v97 = vld [vmem:[#allocation5 + $0x24] sm:$0xf]
    %v98 = vld [vmem:[#allocation5 + $0x28] sm:$0xf]
    %v99 = vld [vmem:[#allocation5 + $0x2c] sm:$0xf]
    %v100 = vld [vmem:[#allocation5 + $0x30] sm:$0xf]
    %v101 = vld [vmem:[#allocation5 + $0x34] sm:$0xf]
    %v102 = vld [vmem:[#allocation5 + $0x38] sm:$0xf]
    %v103 = vld [vmem:[#allocation5 + $0x3c] sm:$0xf]
    %v104 = vld [vmem:[%s2] sm:$0x1]
    %v106 = vlaneseq
    %v107 = vshrl.u32 %v106, 7
    %v108 = vsub.s32 0, %v107
    %v109 = vrot.slane %v104, %v108
    %v127 = vunpack.c.l.b16 %v88
    %v128 = vunpack.c.l.b16 %v89
    %v129 = vunpack.c.l.b16 %v90
    %v130 = vunpack.c.l.b16 %v91
    %v131 = vunpack.c.l.b16 %v92
    %v132 = vunpack.c.l.b16 %v93
    %v133 = vunpack.c.l.b16 %v94
    %v134 = vunpack.c.l.b16 %v95
    %v135 = vunpack.c.l.b16 %v96
    %v136 = vunpack.c.l.b16 %v97
    %v137 = vunpack.c.l.b16 %v98
    %v138 = vunpack.c.l.b16 %v99
    %v139 = vunpack.c.l.b16 %v100
    %v140 = vunpack.c.l.b16 %v101
    %v141 = vunpack.c.l.b16 %v102
    %v142 = vunpack.c.l.b16 %v103
    %v143 = vpack.c.b16 %v128, %v127
    %v144 = vpack.c.b16 %v130, %v129
    %v145 = vpack.c.b16 %v132, %v131
    %v146 = vpack.c.b16 %v134, %v133
    %v147 = vpack.c.b16 %v136, %v135
    %v148 = vpack.c.b16 %v138, %v137
    %v149 = vpack.c.b16 %v140, %v139
    %v150 = vpack.c.b16 %v142, %v141
    %159 = vmatprep.subr.bf16.mxu0 0
    %160 = vmatpush1.bf16.msra.mxu0 %v143
    %161 = vmatprep.subr.bf16.mxu0 0
    %162 = vmatpush1.bf16.msra.mxu0 %v144
    %163 = vmatprep.subr.bf16.mxu0 0
    %164 = vmatpush1.bf16.msra.mxu0 %v145
    %165 = vmatprep.subr.bf16.mxu0 0
    %166 = vmatpush1.bf16.msra.mxu0 %v146
    %167 = vmatprep.subr.bf16.mxu0 0
    %168 = vmatpush1.bf16.msra.mxu0 %v147
    %169 = vmatprep.subr.bf16.mxu0 0
    %170 = vmatpush1.bf16.msra.mxu0 %v148
    %171 = vmatprep.subr.bf16.mxu0 0
    %172 = vmatpush1.bf16.msra.mxu0 %v149
    %173 = vmatprep.subr.bf16.mxu0 0
    %174 = vmatpush1.bf16.msra.mxu0 %v150
    %175 = vmatprep.subr.bf16.mxu0 0
    %176 = vmatpush1.bf16.msra.mxu0 0
    %177 = vmatprep.subr.bf16.mxu0 0
    %178 = vmatpush1.bf16.msra.mxu0 0
    %179 = vmatprep.subr.bf16.mxu0 0
    %180 = vmatpush1.bf16.msra.mxu0 0
    %181 = vmatprep.subr.bf16.mxu0 0
    %182 = vmatpush1.bf16.msra.mxu0 0
    %183 = vmatprep.subr.bf16.mxu0 0
    %184 = vmatpush1.bf16.msra.mxu0 0
    %185 = vmatprep.subr.bf16.mxu0 0
    %186 = vmatpush1.bf16.msra.mxu0 0
    %187 = vmatprep.subr.bf16.mxu0 0
    %188 = vmatpush1.bf16.msra.mxu0 0
    %189 = vmatprep.subr.bf16.mxu0 0
    %190 = vmatpush1.bf16.msra.mxu0 0
    %191 = vmatprep.mubr.bf16.mxu0 0
    %192 = vmatmul.mubr.bf16.gmra.mrb[0].mxu0 %v86
    %v193 = vpop.f32.mrb[0].mxu0
    %v194 = vadd.f32 %v109, %v193
    %v195 = vpop.f32.mrb[0].mxu0
    %v196 = vpop.f32.mrb[0].mxu0
    %v197 = vpop.f32.mrb[0].mxu0
    %198 = vdwg.mxu0
    %v199 = vmax.f32 %v194, 0.0
    %v200 = vpack.c.bf16 %v199, %v199
    %v201 = vld [vmem:[#allocation7] sm:$0xf]
    %v202 = vld [vmem:[#allocation7 + $0x4] sm:$0xf]
    %v203 = vld [vmem:[#allocation7 + $0x8] sm:$0xf]
    %v204 = vld [vmem:[#allocation7 + $0xc] sm:$0xf]
    %v205 = vld [vmem:[#allocation7 + $0x10] sm:$0xf]
    %v206 = vld [vmem:[#allocation7 + $0x14] sm:$0xf]
    %v207 = vld [vmem:[#allocation7 + $0x18] sm:$0xf]
    %v208 = vld [vmem:[#allocation7 + $0x1c] sm:$0xf]
    %v209 = vld [vmem:[#allocation7 + $0x20] sm:$0xf]
    %v210 = vld [vmem:[#allocation7 + $0x24] sm:$0xf]
    %v211 = vld [vmem:[#allocation7 + $0x28] sm:$0xf]
    %v212 = vld [vmem:[#allocation7 + $0x2c] sm:$0xf]
    %v213 = vld [vmem:[#allocation7 + $0x30] sm:$0xf]
    %v214 = vld [vmem:[#allocation7 + $0x34] sm:$0xf]
    %v215 = vld [vmem:[#allocation7 + $0x38] sm:$0xf]
    %v216 = vld [vmem:[#allocation7 + $0x3c] sm:$0xf]
    %v217 = vld [vmem:[%s4] sm:$0x1]
    %v219 = vlaneseq
    %v220 = vshrl.u32 %v219, 7
    %v221 = vsub.s32 0, %v220
    %v222 = vrot.slane %v217, %v221
    %v240 = vunpack.c.l.b16 %v201
    %v241 = vunpack.c.l.b16 %v202
    %v242 = vunpack.c.l.b16 %v203
    %v243 = vunpack.c.l.b16 %v204
    %v244 = vunpack.c.l.b16 %v205
    %v245 = vunpack.c.l.b16 %v206
    %v246 = vunpack.c.l.b16 %v207
    %v247 = vunpack.c.l.b16 %v208
    %v248 = vunpack.c.l.b16 %v209
    %v249 = vunpack.c.l.b16 %v210
    %v250 = vunpack.c.l.b16 %v211
    %v251 = vunpack.c.l.b16 %v212
    %v252 = vunpack.c.l.b16 %v213
    %v253 = vunpack.c.l.b16 %v214
    %v254 = vunpack.c.l.b16 %v215
    %v255 = vunpack.c.l.b16 %v216
    %v256 = vpack.c.b16 %v241, %v240
    %v257 = vpack.c.b16 %v243, %v242
    %v258 = vpack.c.b16 %v245, %v244
    %v259 = vpack.c.b16 %v247, %v246
    %v260 = vpack.c.b16 %v249, %v248
    %v261 = vpack.c.b16 %v251, %v250
    %v262 = vpack.c.b16 %v253, %v252
    %v263 = vpack.c.b16 %v255, %v254
    %272 = vmatprep.subr.bf16.mxu0 0
    %273 = vmatpush1.bf16.msra.mxu0 %v256
    %274 = vmatprep.subr.bf16.mxu0 0
    %275 = vmatpush1.bf16.msra.mxu0 %v257
    %276 = vmatprep.subr.bf16.mxu0 0
    %277 = vmatpush1.bf16.msra.mxu0 %v258
    %278 = vmatprep.subr.bf16.mxu0 0
    %279 = vmatpush1.bf16.msra.mxu0 %v259
    %280 = vmatprep.subr.bf16.mxu0 0
    %281 = vmatpush1.bf16.msra.mxu0 %v260
    %282 = vmatprep.subr.bf16.mxu0 0
    %283 = vmatpush1.bf16.msra.mxu0 %v261
    %284 = vmatprep.subr.bf16.mxu0 0
    %285 = vmatpush1.bf16.msra.mxu0 %v262
    %286 = vmatprep.subr.bf16.mxu0 0
    %287 = vmatpush1.bf16.msra.mxu0 %v263
    %288 = vmatprep.subr.bf16.mxu0 0
    %289 = vmatpush1.bf16.msra.mxu0 0
    %290 = vmatprep.subr.bf16.mxu0 0
    %291 = vmatpush1.bf16.msra.mxu0 0
    %292 = vmatprep.subr.bf16.mxu0 0
    %293 = vmatpush1.bf16.msra.mxu0 0
    %294 = vmatprep.subr.bf16.mxu0 0
    %295 = vmatpush1.bf16.msra.mxu0 0
    %296 = vmatprep.subr.bf16.mxu0 0
    %297 = vmatpush1.bf16.msra.mxu0 0
    %298 = vmatprep.subr.bf16.mxu0 0
    %299 = vmatpush1.bf16.msra.mxu0 0
    %300 = vmatprep.subr.bf16.mxu0 0
    %301 = vmatpush1.bf16.msra.mxu0 0
    %302 = vmatprep.subr.bf16.mxu0 0
    %303 = vmatpush1.bf16.msra.mxu0 0
    %304 = vmatprep.mubr.bf16.mxu0 0
    %305 = vmatmul.mubr.bf16.gmra.mrb[0].mxu0 %v200
    %v306 = vpop.f32.mrb[0].mxu0
    %v307 = vadd.f32 %v222, %v306
    %v308 = vpop.f32.mrb[0].mxu0
    %v309 = vpop.f32.mrb[0].mxu0
    %v310 = vpop.f32.mrb[0].mxu0
    %311 = vdwg.mxu0
    %v312 = vmax.f32 %v307, 0.0
    %v313 = vpack.c.bf16 %v312, %v312
    %v314 = vld [vmem:[#allocation8] sm:$0xf]
    %v315 = vld [vmem:[#allocation8 + $0x4] sm:$0xf]
    %v316 = vld [vmem:[#allocation8 + $0x8] sm:$0xf]
    %v317 = vld [vmem:[#allocation8 + $0xc] sm:$0xf]
    %v318 = vld [vmem:[#allocation8 + $0x10] sm:$0xf]
    %v319 = vld [vmem:[#allocation8 + $0x14] sm:$0xf]
    %v320 = vld [vmem:[#allocation8 + $0x18] sm:$0xf]
    %v321 = vld [vmem:[#allocation8 + $0x1c] sm:$0xf]
    %v322 = vld [vmem:[#allocation8 + $0x20] sm:$0xf]
    %v323 = vld [vmem:[#allocation8 + $0x24] sm:$0xf]
    %v324 = vld [vmem:[#allocation8 + $0x28] sm:$0xf]
    %v325 = vld [vmem:[#allocation8 + $0x2c] sm:$0xf]
    %v326 = vld [vmem:[#allocation8 + $0x30] sm:$0xf]
    %v327 = vld [vmem:[#allocation8 + $0x34] sm:$0xf]
    %v328 = vld [vmem:[#allocation8 + $0x38] sm:$0xf]
    %v329 = vld [vmem:[#allocation8 + $0x3c] sm:$0xf]
    %v330 = vld [vmem:[%s6] sm:$0x1]
    %v332 = vlaneseq
    %v333 = vshrl.u32 %v332, 7
    %v334 = vsub.s32 0, %v333
    %v335 = vrot.slane %v330, %v334
    %v353 = vunpack.c.l.b16 %v314
    %v354 = vunpack.c.l.b16 %v315
    %v355 = vunpack.c.l.b16 %v316
    %v356 = vunpack.c.l.b16 %v317
    %v357 = vunpack.c.l.b16 %v318
    %v358 = vunpack.c.l.b16 %v319
    %v359 = vunpack.c.l.b16 %v320
    %v360 = vunpack.c.l.b16 %v321
    %v361 = vunpack.c.l.b16 %v322
    %v362 = vunpack.c.l.b16 %v323
    %v363 = vunpack.c.l.b16 %v324
    %v364 = vunpack.c.l.b16 %v325
    %v365 = vunpack.c.l.b16 %v326
    %v366 = vunpack.c.l.b16 %v327
    %v367 = vunpack.c.l.b16 %v328
    %v368 = vunpack.c.l.b16 %v329
    %v369 = vpack.c.b16 %v354, %v353
    %v370 = vpack.c.b16 %v356, %v355
    %v371 = vpack.c.b16 %v358, %v357
    %v372 = vpack.c.b16 %v360, %v359
    %v373 = vpack.c.b16 %v362, %v361
    %v374 = vpack.c.b16 %v364, %v363
    %v375 = vpack.c.b16 %v366, %v365
    %v376 = vpack.c.b16 %v368, %v367
    %385 = vmatprep.subr.bf16.mxu0 0
    %386 = vmatpush1.bf16.msra.mxu0 %v369
    %387 = vmatprep.subr.bf16.mxu0 0
    %388 = vmatpush1.bf16.msra.mxu0 %v370
    %389 = vmatprep.subr.bf16.mxu0 0
    %390 = vmatpush1.bf16.msra.mxu0 %v371
    %391 = vmatprep.subr.bf16.mxu0 0
    %392 = vmatpush1.bf16.msra.mxu0 %v372
    %393 = vmatprep.subr.bf16.mxu0 0
    %394 = vmatpush1.bf16.msra.mxu0 %v373
    %395 = vmatprep.subr.bf16.mxu0 0
    %396 = vmatpush1.bf16.msra.mxu0 %v374
    %397 = vmatprep.subr.bf16.mxu0 0
    %398 = vmatpush1.bf16.msra.mxu0 %v375
    %399 = vmatprep.subr.bf16.mxu0 0
    %400 = vmatpush1.bf16.msra.mxu0 %v376
    %401 = vmatprep.subr.bf16.mxu0 0
    %402 = vmatpush1.bf16.msra.mxu0 0
    %403 = vmatprep.subr.bf16.mxu0 0
    %404 = vmatpush1.bf16.msra.mxu0 0
    %405 = vmatprep.subr.bf16.mxu0 0
    %406 = vmatpush1.bf16.msra.mxu0 0
    %407 = vmatprep.subr.bf16.mxu0 0
    %408 = vmatpush1.bf16.msra.mxu0 0
    %409 = vmatprep.subr.bf16.mxu0 0
    %410 = vmatpush1.bf16.msra.mxu0 0
    %411 = vmatprep.subr.bf16.mxu0 0
    %412 = vmatpush1.bf16.msra.mxu0 0
    %413 = vmatprep.subr.bf16.mxu0 0
    %414 = vmatpush1.bf16.msra.mxu0 0
    %415 = vmatprep.subr.bf16.mxu0 0
    %416 = vmatpush1.bf16.msra.mxu0 0
    %417 = vmatprep.mubr.bf16.mxu0 0
    %418 = vmatmul.mubr.bf16.gmra.mrb[0].mxu0 %v313
    %v419 = vpop.f32.mrb[0].mxu0
    %v420 = vadd.f32 %v335, %v419
    %v421 = vpop.f32.mrb[0].mxu0
    %v422 = vpop.f32.mrb[0].mxu0
    %v423 = vpop.f32.mrb[0].mxu0
    %424 = vdwg.mxu0
    %vm425 = vcmask 58368
    %v426 = vsel %vm425, %v420, -inf
    %v427 = vrot.slane %v426, 4
    %v428 = vmax.f32 %v426, %v427
    %v429 = vrot.slane %v428, 2
    %v430 = vmax.f32 %v428, %v429
    %v431 = vrot.slane %v430, 1
    %v432 = vmax.f32 %v430, %v431
    %v433 = vsub.f32 %v420, %v432
    %v434 = vmul.f32 %v433, 1.442695
    %v435 = vpow.pop %v434
    %v436 = vsel %vm425, %v435, 0.0
    %v437 = vrot.slane %v436, 4
    %v438 = vadd.f32 %v436, %v437
    %v439 = vrot.slane %v438, 2
    %v440 = vadd.f32 %v438, %v439
    %v441 = vrot.slane %v440, 1
    %v442 = vadd.f32 %v440, %v441
    %v443 = vrcp.pop %v442
    %v444 = vmul.f32 %v435, %v443
    %445 = vst.msk [vmem:[#allocation10] sm:$0x3] %vm425, %v444
    // Predicated region
    $region46: #{forward.1} parent=1 // pred_check
      _
    $region47: #{forward.1} parent=1 // pred_check_branch
      %447 = sbr.rel (0) target = $region49
    $region48: #{forward.1} parent=1 // pred_region
      %s449 = ssub.s32 32, 32
      %450 = vsyncadd [#allocation4], %s449
      %s452 = sshll.u32 [#allocation10], 4
      %s453 = int_to_ptr.vmem [resolvable:$true] %s452
      %455 = dma.vmem_to_hbm [thread:$0]  %s453, 32, %s7, [#allocation4]
    $region49: #{forward.1} parent=1 // pred_fallthru
      _
    // Predicated region
    $region50: #{forward.1} parent=1 // pred_check
      _
    $region51: #{forward.1} parent=1 // pred_check_branch
      %457 = sbr.rel (0) target = $region53
    $region52: #{forward.1} parent=1 // pred_region
      %458 = dma.done [#allocation4], 32
    $region53: #{forward.1} parent=1 // pred_fallthru
      _
    %459 = vsyncpa [#allocation3], 1
    %460 = vsyncpa [#allocation6], 1
    %461 = vsyncpa [#allocation9], 1
    %462 = vsyncpa [#allocation4], 1

</llo_original>
